<compile_context>
chip_gen: v7x
topology: tpu7x:2x2x1
jax: 0.10.0
libtpu: 0.0.40
codegen_flags: <defaults>
</compile_context>

<pallas_src>
import functools

import jax
import jax.numpy as jnp
from jax.experimental import pallas as pl
from jax.experimental.pallas import tpu as pltpu


_TILE_M_CAP = 4096      # cap on the lane (row-of-work) tile for pointwise matmuls
_APPROX_GELU = False    # keep exact erf GELU (matches torch); set True on v5e if tol allows


# --------------------------------------------------------------------------
# small helpers
# --------------------------------------------------------------------------
def _vmem_limit(*block_bytes):
    """Scoped VMEM limit derived from block bytes (double-buffered) + headroom."""
    need = 2 * sum(int(b) for b in block_bytes) + (4 << 20)
    return int(min(max(need, 16 << 20), 48 << 20))   # stay under v7x 64 MiB physical


def _pick_tile_m(M, bytes_per_col, budget=24 << 20):
    """Largest lane tile (multiple of 128) whose double-buffered blocks fit `budget`."""
    tm = budget // max(2 * bytes_per_col, 1)
    tm = max(128, min(_TILE_M_CAP, (tm // 128) * 128))
    return min(tm, M)


def _mode_group(modes, cap=4):
    for g in range(min(cap, modes), 0, -1):
        if modes % g == 0:
            return g
    return 1


# --------------------------------------------------------------------------
# Pallas kernels — pointwise (1x1 conv) in channels-first (C, M) layout
# --------------------------------------------------------------------------
def _dense_kernel(x_ref, wt_ref, b_ref, o_ref, *, act):
    # out = act(W^T x + b); bf16 operands, f32 accumulation; output lane-dense (Cout, tm).
    y = jnp.dot(wt_ref[...], x_ref[...], preferred_element_type=jnp.float32)
    y = y + b_ref[...]                        # (Cout, 1) broadcasts over lanes
    if act == "gelu":
        y = jax.nn.gelu(y, approximate=_APPROX_GELU)
    o_ref[...] = y.astype(o_ref.dtype)


def _dense_add_kernel(x_ref, wt_ref, b_ref, add_ref, o_ref, *, act):
    # out = act(W^T x + b + add); residual (spectral branch) arrives in f32, added in f32.
    y = jnp.dot(wt_ref[...], x_ref[...], preferred_element_type=jnp.float32)
    y = y + b_ref[...] + add_ref[...]
    if act == "gelu":
        y = jax.nn.gelu(y, approximate=_APPROX_GELU)
    o_ref[...] = y.astype(o_ref.dtype)


def dense_cm(x_cm, w, b, add=None, act=None, out_dtype=jnp.bfloat16):
    """Channels-first pointwise layer.

    x_cm: (Cin, M)  activations (channels on sublanes, M = B*N on lanes).
    w:    (Cin, Cout)   b: (Cout,)   add: (Cout, M) f32 residual or None.
    returns (Cout, M) = act(w.T @ x + b [+ add])    — lane-dense output tiles.
    """
    Cin, M = x_cm.shape
    Cout = w.shape[1]
    out_isz = jnp.dtype(out_dtype).itemsize

    bytes_per_col = 2 * Cin + out_isz * Cout + (4 * Cout if add is not None else 0)
    tm = _pick_tile_m(M, bytes_per_col)
    grid = (pl.cdiv(M, tm),)

    x_bf = x_cm.astype(jnp.bfloat16)
    wt = jnp.transpose(w).astype(jnp.bfloat16)             # (Cout, Cin)
    b2 = b.reshape(Cout, 1).astype(jnp.float32)

    x_spec = pl.BlockSpec((Cin, tm), lambda i: (0, i))
    wt_spec = pl.BlockSpec((Cout, Cin), lambda i: (0, 0))
    b_spec = pl.BlockSpec((Cout, 1), lambda i: (0, 0))
    o_spec = pl.BlockSpec((Cout, tm), lambda i: (0, i))

    blk_bytes = [Cin * tm * 2, Cout * Cin * 2, Cout * 4, Cout * tm * out_isz]
    if add is not None:
        blk_bytes.append(Cout * tm * 4)

    cparams = pltpu.CompilerParams(
        dimension_semantics=("parallel",),                  # row-tile split across TCs (v7x)
        vmem_limit_bytes=_vmem_limit(*blk_bytes),
    )

    if add is None:
        kernel = functools.partial(_dense_kernel, act=act)
        return pl.pallas_call(
            kernel,
            out_shape=jax.ShapeDtypeStruct((Cout, M), out_dtype),
            grid=grid,
            in_specs=[x_spec, wt_spec, b_spec],
            out_specs=o_spec,
            compiler_params=cparams,
        )(x_bf, wt, b2)

    kernel = functools.partial(_dense_add_kernel, act=act)
    add_spec = pl.BlockSpec((Cout, tm), lambda i: (0, i))
    return pl.pallas_call(
        kernel,
        out_shape=jax.ShapeDtypeStruct((Cout, M), out_dtype),
        grid=grid,
        in_specs=[x_spec, wt_spec, b_spec, add_spec],
        out_specs=o_spec,
        compiler_params=cparams,
    )(x_bf, wt, b2, add.astype(jnp.float32))                # f32 residual — no bf16 pass


# --------------------------------------------------------------------------
# Fused projection MLP (channels-first): out = W2^T gelu(W1^T x + b1) + b2
# --------------------------------------------------------------------------
def _proj_kernel(x_ref, w1t_ref, b1_ref, w2t_ref, b2_ref, o_ref):
    p = jnp.dot(w1t_ref[...], x_ref[...], preferred_element_type=jnp.float32)
    p = jax.nn.gelu(p + b1_ref[...], approximate=_APPROX_GELU)
    y = jnp.dot(w2t_ref[...], p.astype(w2t_ref.dtype),
                preferred_element_type=jnp.float32)
    o_ref[...] = (y + b2_ref[...]).astype(o_ref.dtype)


def proj_mlp_cm(x_cm, w1, b1, w2, b2):
    """x_cm: (H, M) -> (V, M) f32; intermediate (P, tm) never leaves VMEM."""
    H, M = x_cm.shape
    P = w1.shape[1]
    V = w2.shape[1]
    bytes_per_col = 2 * H + 4 * P + 4 * V
    tm = _pick_tile_m(M, bytes_per_col)
    grid = (pl.cdiv(M, tm),)

    blk_bytes = [H * tm * 2, P * H * 2, P * 4, V * P * 2, V * 4, V * tm * 4, P * tm * 4]
    return pl.pallas_call(
        _proj_kernel,
        out_shape=jax.ShapeDtypeStruct((V, M), jnp.float32),
        grid=grid,
        in_specs=[
            pl.BlockSpec((H, tm), lambda i: (0, i)),
            pl.BlockSpec((P, H), lambda i: (0, 0)),
            pl.BlockSpec((P, 1), lambda i: (0, 0)),
            pl.BlockSpec((V, P), lambda i: (0, 0)),
            pl.BlockSpec((V, 1), lambda i: (0, 0)),
        ],
        out_specs=pl.BlockSpec((V, tm), lambda i: (0, i)),   # lane-dense (V, tm) tile
        compiler_params=pltpu.CompilerParams(
            dimension_semantics=("parallel",),
            vmem_limit_bytes=_vmem_limit(*blk_bytes),
        ),
    )(x_cm.astype(jnp.bfloat16),
      jnp.transpose(w1).astype(jnp.bfloat16), b1.reshape(P, 1).astype(jnp.float32),
      jnp.transpose(w2).astype(jnp.bfloat16), b2.reshape(V, 1).astype(jnp.float32))


# --------------------------------------------------------------------------
# Spectral mixer: grid over mode groups, one MXU matmul per retained mode
#   [out_r | out_i] = [xr | xi] @ [[wr, wi], [-wi, wr]]        (all f32)
# --------------------------------------------------------------------------
def _spectral_kernel(x_ref, w_ref, o_ref, *, group):
    for g in range(group):
        o_ref[g] = jnp.dot(x_ref[g], w_ref[g], preferred_element_type=jnp.float32)


def spectral_mix(x_stk, w_stk):
    """x_stk:(modes,B,2Ci) f32; w_stk:(modes,2Ci,2Co) f32 -> (modes,B,2Co) f32."""
    Mds, B, K2 = x_stk.shape
    Co2 = w_stk.shape[2]
    group = _mode_group(Mds)
    grid = (Mds // group,)
    blk_bytes = [group * B * K2 * 4, group * K2 * Co2 * 4, group * B * Co2 * 4]
    kernel = functools.partial(_spectral_kernel, group=group)
    return pl.pallas_call(
        kernel,
        out_shape=jax.ShapeDtypeStruct((Mds, B, Co2), jnp.float32),
        grid=grid,
        in_specs=[
            pl.BlockSpec((group, B, K2), lambda i: (i, 0, 0)),
            pl.BlockSpec((group, K2, Co2), lambda i: (i, 0, 0)),
        ],
        out_specs=pl.BlockSpec((group, B, Co2), lambda i: (i, 0, 0)),
        compiler_params=pltpu.CompilerParams(
            dimension_semantics=("parallel",),              # modes split across TCs (v7x)
            vmem_limit_bytes=_vmem_limit(*blk_bytes),
        ),
    )(x_stk.astype(jnp.float32), w_stk.astype(jnp.float32))


# --------------------------------------------------------------------------
# Spectral conv (1D) in channels-first layout
# --------------------------------------------------------------------------
def spectral_conv1d_cm(h_cm, wr, wi, modes, B, N):
    """h_cm: (Ci, B*N) -> (Co, B*N) f32 real (spectral branch)."""
    Ci = h_cm.shape[0]
    Co = wr.shape[2]
    h3 = h_cm.reshape(Ci, B, N).astype(jnp.float32)
    x_ft = jnp.fft.rfft(h3, axis=-1)                        # (Ci, B, N//2+1) c64
    x_low = x_ft[:, :, :modes]                              # (Ci, B, modes)
    # Stack real|imag on the channel (lane) axis; modes leading for per-mode blocks.
    xr = jnp.transpose(x_low.real, (2, 1, 0))               # (modes, B, Ci)
    xi = jnp.transpose(x_low.imag, (2, 1, 0))
    x_stk = jnp.concatenate([xr, xi], axis=-1)              # (modes, B, 2Ci) f32
    # Stacked complex weight [[wr, wi], [-wi, wr]] -> single real matmul per mode.
    w_top = jnp.concatenate([wr, wi], axis=-1)              # (modes, Ci, 2Co)
    w_bot = jnp.concatenate([-wi, wr], axis=-1)
    w_stk = jnp.concatenate([w_top, w_bot], axis=1)         # (modes, 2Ci, 2Co) f32

    out = spectral_mix(x_stk, w_stk)                        # (modes, B, 2Co) f32
    out_r = jnp.transpose(out[..., :Co], (2, 1, 0))         # (Co, B, modes)
    out_i = jnp.transpose(out[..., Co:], (2, 1, 0))
    full = jnp.zeros((Co, B, N // 2 + 1), jnp.complex64)
    full = full.at[:, :, :modes].set(jax.lax.complex(out_r, out_i))
    spec = jnp.fft.irfft(full, n=N, axis=-1)                # (Co, B, N) f32
    return spec.reshape(Co, B * N)


# --------------------------------------------------------------------------
# FNO model (1D, x_dim = 1)
# --------------------------------------------------------------------------
def init_fno_params(key, modes, vis_channels, hidden_channels, proj_channels,
                    x_dim=1, n_layers=4):
    in_channels = vis_channels + x_dim + 1
    keys = jax.random.split(key, 3 + 3 * n_layers)
    ki = iter(keys)
    params = {}
    params["W_lift"] = jax.random.normal(next(ki), (in_channels, hidden_channels),
                                         jnp.float32) * (1.0 / in_channels) ** 0.5
    params["b_lift"] = jnp.zeros((hidden_channels,), jnp.float32)
    scale = 1.0 / (hidden_channels * hidden_channels)
    params["layers"] = []
    for _ in range(n_layers):
        lw = {
            "wr": scale * jax.random.normal(next(ki), (modes, hidden_channels, hidden_channels), jnp.float32),
            "wi": scale * jax.random.normal(next(ki), (modes, hidden_channels, hidden_channels), jnp.float32),
            "W_skip": jax.random.normal(next(ki), (hidden_channels, hidden_channels), jnp.float32)
                      * (1.0 / hidden_channels) ** 0.5,
            "b_skip": jnp.zeros((hidden_channels,), jnp.float32),
        }
        params["layers"].append(lw)
    params["W_p1"] = jax.random.normal(next(ki), (hidden_channels, proj_channels),
                                       jnp.float32) * (1.0 / hidden_channels) ** 0.5
    params["b_p1"] = jnp.zeros((proj_channels,), jnp.float32)
    params["W_p2"] = jax.random.normal(next(ki), (proj_channels, vis_channels),
                                       jnp.float32) * (1.0 / proj_channels) ** 0.5
    params["b_p2"] = jnp.zeros((vis_channels,), jnp.float32)
    params["modes"] = modes
    return params


def fno_core(params, x_cm, B, N):
    """x_cm: (in_channels, B*N) -> (vis_channels, B*N) f32, channels-first."""
    n_layers = len(params["layers"])
    # lifting (no residual -> no zeros tensor materialized or DMA'd)
    h = dense_cm(x_cm, params["W_lift"], params["b_lift"])          # (H, M) bf16

    # spectral blocks: h -> gelu(spectral(h) + W_skip h + b)   (gelu skipped on last)
    for li, lw in enumerate(params["layers"]):
        spec = spectral_conv1d_cm(h, lw["wr"], lw["wi"], params["modes"], B, N)  # (H,M) f32
        act = "gelu" if li < n_layers - 1 else None
        h = dense_cm(h, lw["W_skip"], lw["b_skip"], add=spec, act=act)

    # fused projection MLP, lane-dense (V, M) output
    return proj_mlp_cm(h, params["W_p1"], params["b_p1"], params["W_p2"], params["b_p2"])


# --------------------------------------------------------------------------
# Wrapper reproducing the PyTorch FNO.forward (x_dim = 1)
# --------------------------------------------------------------------------
def fno_forward(params, t, u, t_scaling=1.0):
    """t: scalar or (B,); u: (B, vis_channels, N) channels-first (NCL)."""
    t = jnp.asarray(t, jnp.float32) / t_scaling
    B, V, N = u.shape
    if t.ndim == 0 or t.size == 1:
        t = jnp.ones((B,), jnp.float32) * jnp.reshape(t, ())
    t_ch = jnp.broadcast_to(t.reshape(1, B, 1), (1, B, N)).astype(jnp.float32)   # t_allhot
    pos = jnp.broadcast_to(jnp.linspace(0.0, 1.0, N)[None, None, :],
                           (1, B, N)).astype(jnp.float32)                        # posn embed
    u_cm = jnp.transpose(u, (1, 0, 2)).astype(jnp.float32)                       # (V, B, N)
    x_cm = jnp.concatenate([u_cm, pos, t_ch], axis=0)                            # (C_in, B, N)
    x_cm = x_cm.reshape(x_cm.shape[0], B * N)
    out_cm = fno_core(params, x_cm, B, N)                                        # (V, B*N) f32
    return jnp.transpose(out_cm.reshape(V, B, N), (1, 0, 2))                     # (B, V, N) NCL


# --------------------------------------------------------------------------
if __name__ == "__main__":
    key = jax.random.PRNGKey(0)
    k_param, k_u = jax.random.split(key)

    # small 1D problem: batch=2, vis_channels=3, spatial=64, hidden=32, proj=32, modes=8
    B, VIS, N = 2, 3, 64
    MODES, HID, PROJ = 8, 32, 32

    params = init_fno_params(k_param, MODES, VIS, HID, PROJ, x_dim=1)

    u = jax.random.normal(k_u, (B, VIS, N), jnp.float32)
    t = jnp.float32(0.5)

    out = fno_forward(params, t, u, t_scaling=1.0)
    out = jax.block_until_ready(out)

    assert out.shape == (B, VIS, N), out.shape
    assert jnp.all(jnp.isfinite(out))
    print("KERNEL_OK")
</pallas_src>

<mosaic_0001>
module attributes {stable_mosaic.version = 11 : i64} {
  func.func @_dense_kernel(%arg0: i32, %arg1: memref<5x128xbf16, #tpu.memory_space<vmem>>, %arg2: memref<32x5xbf16, #tpu.memory_space<vmem>>, %arg3: memref<32x1xf32, #tpu.memory_space<vmem>>, %arg4: memref<32x128xbf16, #tpu.memory_space<vmem>>) attributes {dimension_semantics = [#tpu.dimension_semantics<parallel>], iteration_bounds = array<i64: 1>, scalar_prefetch = 0 : i64, scratch_operands = 0 : i64, tpu.core_type = #tpu.core_type<tc>, window_params = [{transform_indices = @transform_0, window_bounds = array<i64: 5, 128>}, {pipeline_mode = #tpu.pipeline_mode<synchronous>, transform_indices = @transform_1, window_bounds = array<i64: 32, 5>}, {pipeline_mode = #tpu.pipeline_mode<synchronous>, transform_indices = @transform_2, window_bounds = array<i64: 32, 1>}, {transform_indices = @transform_3, window_bounds = array<i64: 32, 128>}]} {
    %c0 = arith.constant 0 : index
    %c0_0 = arith.constant 0 : index
    %0 = vector.load %arg2[%c0, %c0_0] : memref<32x5xbf16, #tpu.memory_space<vmem>>, vector<32x5xbf16>
    %c0_1 = arith.constant 0 : index
    %c0_2 = arith.constant 0 : index
    %1 = vector.load %arg1[%c0_1, %c0_2] : memref<5x128xbf16, #tpu.memory_space<vmem>>, vector<5x128xbf16>
    %cst = arith.constant dense<0.000000e+00> : vector<32x128xf32>
    %2 = tpu.matmul %0, %1, %cst {dimension_numbers = #tpu.dot_dimension_numbers<[1], [0], [0], [1], [0, 0, 1, 1], [], []>} : vector<32x5xbf16>, vector<5x128xbf16>, vector<32x128xf32> -> vector<32x128xf32>
    %c0_3 = arith.constant 0 : index
    %c0_4 = arith.constant 0 : index
    %3 = vector.load %arg3[%c0_3, %c0_4] : memref<32x1xf32, #tpu.memory_space<vmem>>, vector<32x1xf32>
    %4 = vector.broadcast %3 : vector<32x1xf32> to vector<32x128xf32>
    %5 = arith.addf %2, %4 : vector<32x128xf32>
    %6 = arith.truncf %5 : vector<32x128xf32> to vector<32x128xbf16>
    %c0_5 = arith.constant 0 : index
    %c0_6 = arith.constant 0 : index
    %7 = vector.load %arg4[%c0_5, %c0_6] : memref<32x128xbf16, #tpu.memory_space<vmem>>, vector<32x128xbf16>
    tpu.vector_store %arg4[%c0_5, %c0_6], %6 {strides = array<i32>} : memref<32x128xbf16, #tpu.memory_space<vmem>>, vector<32x128xbf16>,
    return
  }
  func.func @transform_0(%arg0: i32) -> (i32, i32) {
    %c0_i32 = arith.constant 0 : i32
    %c0_i32_0 = arith.constant 0 : i32
    return %c0_i32, %arg0 : i32, i32
  }
  func.func @transform_1(%arg0: i32) -> (i32, i32) {
    %c0_i32 = arith.constant 0 : i32
    %c0_i32_0 = arith.constant 0 : i32
    %c0_i32_1 = arith.constant 0 : i32
    return %c0_i32, %c0_i32_0 : i32, i32
  }
  func.func @transform_2(%arg0: i32) -> (i32, i32) {
    %c0_i32 = arith.constant 0 : i32
    %c0_i32_0 = arith.constant 0 : i32
    %c0_i32_1 = arith.constant 0 : i32
    return %c0_i32, %c0_i32_0 : i32, i32
  }
  func.func @transform_3(%arg0: i32) -> (i32, i32) {
    %c0_i32 = arith.constant 0 : i32
    %c0_i32_0 = arith.constant 0 : i32
    return %c0_i32, %arg0 : i32, i32
  }
}

</mosaic_0001>

<llo_original>
// kernel: tpu_custom_call.1
$region0: #{tpu_custom_call.1}
  #allocation0 [shape = 'u32[]', space=smem, size = 0x4, offset = 0x4, fixed_abs, tag = 'smem constant byte address 0x4 - core index']
  #allocation1 [shape = 'u32[144,128]{1,0:T(1,128)}', space=vmem, size = 0x12000, scoped, tag = 'internal scratch']
  %s0 = inlined_call_operand.vmem [shape: bf16[5,128], index: 0, kind: input, shape index: {}]
  %s1 = inlined_call_operand.vmem [shape: bf16[32,5], index: 1, kind: input, shape index: {}]
  %s2 = inlined_call_operand.vmem [shape: f32[32,1], index: 2, kind: input, shape index: {}]
  %s3 = inlined_call_operand.hbm [shape: bf16[32,128], index: 3, kind: output, shape index: {}]
  %s4 = sld [smem:[#allocation0]]
  $region22: #{tpu_custom_call.1} parent=0
    _
  %s6 = ssub.s32 1, %s4
  %s7 = scalar_select 0, %s6, %s4
  $region1: #{tpu_custom_call.1} parent=0
    #allocation2 [shape = 'u8[8192]{0}', space=vmem, size = 0x2000, scoped, tag = 'output window, operand 0, single buffered']
    #allocation3 [shape = 's32[1]{0}', space=sflag, size = 0x4, scoped, tag = 'scoped memory for tpu_custom_call.1']
    %8 = vsyncpa [#allocation3], 0
    // Predicated region
    $region2: #{tpu_custom_call.1} parent=1 // pred_check
      _
    $region3: #{tpu_custom_call.1} parent=1 // pred_check_branch
      %10 = sbr.rel (0) target = $region5
    $region4: #{tpu_custom_call.1} parent=1 // pred_region
      _
    $region5: #{tpu_custom_call.1} parent=1 // pred_fallthru
      _
    // Predicated region
    $region6: #{tpu_custom_call.1} parent=1 // pred_check
      _
    $region7: #{tpu_custom_call.1} parent=1 // pred_check_branch
      %12 = sbr.rel (0) target = $region9
    $region8: #{tpu_custom_call.1} parent=1 // pred_region
      _
    $region9: #{tpu_custom_call.1} parent=1 // pred_fallthru
      _
    // Predicated region
    $region10: #{tpu_custom_call.1} parent=1 // pred_check
      _
    $region11: #{tpu_custom_call.1} parent=1 // pred_check_branch
      %14 = sbr.rel (0) target = $region13
    $region12: #{tpu_custom_call.1} parent=1 // pred_region
      _
    $region13: #{tpu_custom_call.1} parent=1 // pred_fallthru
      _
    %v16 = vld [vmem:[%s1] sm:$0xf]
    %v17 = vld [vmem:[%s1 + $0x4] sm:$0xf]
    %v18 = vld [vmem:[%s1 + $0x8] sm:$0xf]
    %v19 = vld [vmem:[%s1 + $0xc] sm:$0xf]
    %v20 = vld [vmem:[%s0] sm:$0x7]
    %v21 = vld [vmem:[%s2] sm:$0xff]
    %v22 = vld [vmem:[%s2 + $0x8] sm:$0xff]
    %v23 = vld [vmem:[%s2 + $0x10] sm:$0xff]
    %v24 = vld [vmem:[%s2 + $0x18] sm:$0xff]
    %26 = vset.pattern.permute.xlu0 0
    %27 = vperm.xlu0 %26, %v21
    %v28 = vpop.permute.xlu0 %27
    %31 = vset.pattern.permute.xlu0 0
    %32 = vperm.xlu0 %31, %v22
    %v33 = vpop.permute.xlu0 %32
    %36 = vset.pattern.permute.xlu0 0
    %37 = vperm.xlu0 %36, %v23
    %v38 = vpop.permute.xlu0 %37
    %41 = vset.pattern.permute.xlu0 0
    %42 = vperm.xlu0 %41, %v24
    %v43 = vpop.permute.xlu0 %42
    %v49 = vunpack.c.l.b16 %v16
    %v50 = vunpack.c.l.b16 %v17
    %v51 = vunpack.c.l.b16 %v18
    %v52 = vunpack.c.l.b16 %v19
    %v53 = vpack.c.b16 %v50, %v49
    %v54 = vpack.c.b16 %v52, %v51
    %vm55 = vcmask 39936
    %v57 = vsel %vm55, %v53, 0
    %v60 = vsel %vm55, %v54, 0
    %vm62 = vcmask 1041408
    %vm63 = vcmask 1042432
    %v64 = vsel %vm62, 4294967295, 65535
    %v65 = vsel %vm63, %v64, 0
    %v67 = vand.u32 %v20, %v65
    %69 = vmatprep.subr.bf16.mxu0 0
    %70 = vmatpush1.bf16.msra.mxu0 %v67
    %71 = vmatprep.subr.bf16.mxu0 0
    %72 = vmatpush1.bf16.msra.mxu0 0
    %73 = vmatprep.subr.bf16.mxu0 0
    %74 = vmatpush1.bf16.msra.mxu0 0
    %75 = vmatprep.subr.bf16.mxu0 0
    %76 = vmatpush1.bf16.msra.mxu0 0
    %77 = vmatprep.subr.bf16.mxu0 0
    %78 = vmatpush1.bf16.msra.mxu0 0
    %79 = vmatprep.subr.bf16.mxu0 0
    %80 = vmatpush1.bf16.msra.mxu0 0
    %81 = vmatprep.subr.bf16.mxu0 0
    %82 = vmatpush1.bf16.msra.mxu0 0
    %83 = vmatprep.subr.bf16.mxu0 0
    %84 = vmatpush1.bf16.msra.mxu0 0
    %85 = vmatprep.subr.bf16.mxu0 0
    %86 = vmatpush1.bf16.msra.mxu0 0
    %87 = vmatprep.subr.bf16.mxu0 0
    %88 = vmatpush1.bf16.msra.mxu0 0
    %89 = vmatprep.subr.bf16.mxu0 0
    %90 = vmatpush1.bf16.msra.mxu0 0
    %91 = vmatprep.subr.bf16.mxu0 0
    %92 = vmatpush1.bf16.msra.mxu0 0
    %93 = vmatprep.subr.bf16.mxu0 0
    %94 = vmatpush1.bf16.msra.mxu0 0
    %95 = vmatprep.subr.bf16.mxu0 0
    %96 = vmatpush1.bf16.msra.mxu0 0
    %97 = vmatprep.subr.bf16.mxu0 0
    %98 = vmatpush1.bf16.msra.mxu0 0
    %99 = vmatprep.subr.bf16.mxu0 0
    %100 = vmatpush1.bf16.msra.mxu0 0
    %101 = vmatprep.mubr.bf16.mxu0 0
    %102 = vmatmul.mubr.bf16.gmra.mrb[0].mxu0 %v57
    %v103 = vpop.f32.mrb[0].mxu0
    %v104 = vadd.f32 %v28, %v103
    %v105 = vpop.f32.mrb[0].mxu0
    %v106 = vpop.f32.mrb[0].mxu0
    %v107 = vadd.f32 %v33, %v106
    %v108 = vpop.f32.mrb[0].mxu0
    %109 = vmatprep.mubr.bf16.mxu0 0
    %110 = vmatmul.mubr.bf16.gmra.mrb[0].mxu0 %v60
    %v111 = vpop.f32.mrb[0].mxu0
    %v112 = vadd.f32 %v38, %v111
    %v113 = vpop.f32.mrb[0].mxu0
    %v114 = vpop.f32.mrb[0].mxu0
    %v115 = vadd.f32 %v43, %v114
    %v116 = vpop.f32.mrb[0].mxu0
    %117 = vdwg.mxu0
    %v118 = vpack.c.bf16 %v107, %v104
    %v119 = vpack.c.bf16 %v115, %v112
    %v122 = vunpack.c.l.b16 %v118
    %v123 = vunpack.c.h.b16 %v118
    %v124 = vunpack.c.l.b16 %v119
    %v125 = vunpack.c.h.b16 %v119
    %v126 = vpack.c.b16 %v122, %v122
    %v127 = vpack.c.b16 %v123, %v123
    %v128 = vpack.c.b16 %v124, %v124
    %v129 = vpack.c.b16 %v125, %v125
    %134 = vst [vmem:[#allocation2] sm:$0xf] %v126
    %135 = vst [vmem:[#allocation2 + $0x4] sm:$0xf] %v127
    %136 = vst [vmem:[#allocation2 + $0x8] sm:$0xf] %v128
    %137 = vst [vmem:[#allocation2 + $0xc] sm:$0xf] %v129
    // Predicated region
    $region14: #{tpu_custom_call.1} parent=1 // pred_check
      _
    $region15: #{tpu_custom_call.1} parent=1 // pred_check_branch
      %139 = sbr.rel (0) target = $region17
    $region16: #{tpu_custom_call.1} parent=1 // pred_region
      %s141 = ssub.s32 256, 256
      %142 = vsyncadd [#allocation3], %s141
      %s143 = sshll.u32 [#allocation2], 4
      %s144 = int_to_ptr.vmem [resolvable:$true] %s143
      %149 = dma.vmem_to_hbm [thread:$0]  %s144, 256, %s3, [#allocation3], 64, 64, 4
    $region17: #{tpu_custom_call.1} parent=1 // pred_fallthru
      _
    // Predicated region
    $region18: #{tpu_custom_call.1} parent=1 // pred_check
      _
    $region19: #{tpu_custom_call.1} parent=1 // pred_check_branch
      %151 = sbr.rel (0) target = $region21
    $region20: #{tpu_custom_call.1} parent=1 // pred_region
      %152 = dma.done [#allocation3], 256
    $region21: #{tpu_custom_call.1} parent=1 // pred_fallthru
      _
    %153 = vsyncpa [#allocation3], 1

</llo_original>
